<compile_context>
chip_gen: v7x
topology: tpu7x:2x2x1
jax: 0.10.0
libtpu: 0.0.40
codegen_flags: <defaults>
</compile_context>

<pallas_src>
import functools

import jax
import jax.numpy as jnp
from jax.experimental import pallas as pl
from jax.experimental.pallas import tpu as pltpu


# -----------------------------------------------------------------------------
# Kernel: one fused evaluation of equivalent_func (f_type = 'last' or 'first').
#   'last' :  [fb_num-1 feedback layers] -> (S[-1](a)+X(x)) -> feedforward layers
#   'first':  [num_s-1 layers]           -> (S[-1](a)+X(x))
# refs layout: a, x, (w_i, b_i) for i in 0..num_s-2, w_fused, b_fused, out
# -----------------------------------------------------------------------------
def _equiv_func_kernel(num_s, fb_num, vth, f_type, *refs):
    a_ref, x_ref = refs[0], refs[1]
    n_plain = num_s - 1
    wb = refs[2:2 + 2 * n_plain]
    wf_ref = refs[2 + 2 * n_plain]
    bf_ref = refs[3 + 2 * n_plain]
    out_ref = refs[4 + 2 * n_plain]

    inv_vth = jnp.float32(1.0 / vth)

    def layer(idx, v_f32):
        # bf16 MXU operands, f32 accumulation; elementwise stays f32.
        w = wb[2 * idx][...]                      # bf16 [Din, Dout]
        b = wb[2 * idx + 1][0:1, :]               # f32  [1,  Dout]
        z = jnp.dot(v_f32.astype(jnp.bfloat16), w,
                    preferred_element_type=jnp.float32) + b
        return jnp.clip(z * inv_vth, 0.0, 1.0)

    def fused_layer(v_f32):
        # clamp((a @ W_last + x @ W_x + b_last + b_x) / vth, 0, 1) computed as
        # [a | x] @ [W_last ; W_x] -- one K = D_a + D_x dot filling the MXU.
        ax = jnp.concatenate([v_f32.astype(jnp.bfloat16),
                              x_ref[...].astype(jnp.bfloat16)], axis=-1)
        z = jnp.dot(ax, wf_ref[...],
                    preferred_element_type=jnp.float32) + bf_ref[0:1, :]
        return jnp.clip(z * inv_vth, 0.0, 1.0)

    a = a_ref[...].astype(jnp.float32)

    if f_type == 'first':
        for i in range(num_s - 1):
            a = layer(i, a)
        a = fused_layer(a)
    else:  # 'last'
        for i in range(fb_num - 1):
            a = layer(num_s - fb_num + i, a)
        a = fused_layer(a)
        for i in range(num_s - fb_num):
            a = layer(i, a)

    out_ref[...] = a.astype(out_ref.dtype)


def equivalent_func_pallas(a, x, s_params, x_params, vth, fb_num=1,
                           f_type='last', batch_tile=128):
    """a: [B, D], x: [B, Dx]; s_params: list of (W [Din,Dout], b [1,Dout]);
    x_params: (Wx [Dx,Dout_last], bx [1,Dout_last])."""
    num_s = len(s_params)
    B, D = a.shape
    Dx = x.shape[1]

    if f_type == 'first':
        out_dim = s_params[-1][0].shape[1]
    else:
        out_dim = (s_params[num_s - fb_num - 1][0].shape[1]
                   if num_s - fb_num > 0 else s_params[-1][0].shape[1])

    batch_tile = min(batch_tile, B)
    assert B % batch_tile == 0 and batch_tile % 8 == 0
    grid = (B // batch_tile,)

    def prep_w(w):
        # bf16 weights: halve HBM/VMEM traffic, native MXU input dtype.
        return w.astype(jnp.bfloat16)

    def prep_b(b):
        # pad bias to a full (8, Dout) sublane tile (replicated rows), f32.
        b = b.astype(jnp.float32).reshape(1, -1)
        return jnp.broadcast_to(b, (8, b.shape[-1]))

    # Fuse last feedback layer with the external-input branch at prep time.
    w_last, b_last = s_params[-1]
    wx, bx = x_params
    w_fused = prep_w(jnp.concatenate([w_last, wx], axis=0))   # [D_a+Dx, Dout]
    b_fused = prep_b(b_last.reshape(1, -1) + bx.reshape(1, -1))

    # batch-tiled specs for a / x / out; weights & biases are full blocks with
    # constant block index -> resident in VMEM across the grid.
    a_spec = pl.BlockSpec((batch_tile, D), lambda i: (i, 0))
    x_spec = pl.BlockSpec((batch_tile, Dx), lambda i: (i, 0))
    out_spec = pl.BlockSpec((batch_tile, out_dim), lambda i: (i, 0))

    in_specs = [a_spec, x_spec]
    flat_params = []
    flops = 0
    param_bytes = 0
    for (w, b) in s_params[:-1]:
        wp, bp = prep_w(w), prep_b(b)
        in_specs.append(pl.BlockSpec(wp.shape, lambda i: (0, 0)))
        in_specs.append(pl.BlockSpec(bp.shape, lambda i: (0, 0)))
        flat_params += [wp, bp]
        flops += 2 * B * w.shape[0] * w.shape[1]
        param_bytes += wp.size * 2 + bp.size * 4
    in_specs.append(pl.BlockSpec(w_fused.shape, lambda i: (0, 0)))
    in_specs.append(pl.BlockSpec(b_fused.shape, lambda i: (0, 0)))
    flat_params += [w_fused, b_fused]
    flops += 2 * B * w_fused.shape[0] * w_fused.shape[1]
    param_bytes += w_fused.size * 2 + b_fused.size * 4

    bytes_accessed = a.size * 4 + x.size * 4 + B * out_dim * 4 + param_bytes

    kernel = functools.partial(_equiv_func_kernel, num_s, fb_num, float(vth),
                               f_type)

    # NOTE: output kept f32 for exact comparison with the reference semantics;
    # switch to bfloat16 if the consumer accepts it (halves writeback traffic).
    return pl.pallas_call(
        kernel,
        out_shape=jax.ShapeDtypeStruct((B, out_dim), jnp.float32),
        grid_spec=pltpu.PrefetchScalarGridSpec(
            num_scalar_prefetch=0,
            grid=grid,
            in_specs=in_specs,
            out_specs=out_spec,
        ),
        compiler_params=pltpu.CompilerParams(
            dimension_semantics=("parallel",)),
        cost_estimate=pl.CostEstimate(flops=flops, transcendentals=0,
                                      bytes_accessed=bytes_accessed),
    )(a, x, *flat_params)


# -----------------------------------------------------------------------------
# Pure-JAX reference (mirrors the PyTorch equivalent_func exactly);
# matmul_dtype=bf16 mirrors the kernel's MXU precision for a tight check.
# -----------------------------------------------------------------------------
def equivalent_func_ref(a, x, s_params, x_params, vth, fb_num=1,
                        f_type='last', matmul_dtype=jnp.float32):
    num_s = len(s_params)

    def lin(p, v):
        w, b = p
        return jnp.dot(v.astype(matmul_dtype), w.astype(matmul_dtype),
                       preferred_element_type=jnp.float32) + b

    if f_type == 'first':
        for i in range(num_s - 1):
            a = jnp.clip(lin(s_params[i], a) / vth, 0.0, 1.0)
        return jnp.clip((lin(s_params[-1], a) + lin(x_params, x)) / vth,
                        0.0, 1.0)

    for i in range(fb_num - 1):
        a = jnp.clip(lin(s_params[num_s - fb_num + i], a) / vth, 0.0, 1.0)
    a = jnp.clip((lin(s_params[-1], a) + lin(x_params, x)) / vth, 0.0, 1.0)
    for i in range(num_s - fb_num):
        a = jnp.clip(lin(s_params[i], a) / vth, 0.0, 1.0)
    return a


# -----------------------------------------------------------------------------
# Parameter construction (deterministic, synthetic -- no checkpoint loading)
# -----------------------------------------------------------------------------
def make_linear_params(key, d_in, d_out):
    kw, kb = jax.random.split(key)
    bound = 1.0 / jnp.sqrt(d_in)
    # stored already transposed to [D_in, D_out] for `a @ W`
    w = jax.random.uniform(kw, (d_in, d_out), jnp.float32, -bound, bound)
    b = jax.random.uniform(kb, (1, d_out), jnp.float32, -bound, bound)
    return w, b


if __name__ == "__main__":
    key = jax.random.PRNGKey(0)
    B, D, Dx = 256, 128, 128    # B = 2 * batch_tile -> 2 parallel grid steps
    num_s = 3
    vth = 1.5

    keys = jax.random.split(key, num_s + 3)
    # network_s_list: 3 linear layers, all D -> D
    s_params = [make_linear_params(keys[i], D, D) for i in range(num_s)]
    # network_x: Dx -> D (adds into the feedback layer's pre-activation)
    x_params = make_linear_params(keys[num_s], Dx, D)

    a0 = jax.random.uniform(keys[num_s + 1], (B, D), jnp.float32)   # state `a`
    x0 = jax.random.normal(keys[num_s + 2], (B, Dx), jnp.float32)   # input `x`

    def run_and_check(fb_num, f_type):
        out = jax.block_until_ready(
            equivalent_func_pallas(a0, x0, s_params, x_params, vth,
                                   fb_num=fb_num, f_type=f_type))
        ref_bf16 = equivalent_func_ref(a0, x0, s_params, x_params, vth,
                                       fb_num=fb_num, f_type=f_type,
                                       matmul_dtype=jnp.bfloat16)
        ref_f32 = equivalent_func_ref(a0, x0, s_params, x_params, vth,
                                      fb_num=fb_num, f_type=f_type,
                                      matmul_dtype=jnp.float32)
        assert out.shape == ref_f32.shape
        # tight check vs. a reference using the same bf16 MXU precision
        assert jnp.max(jnp.abs(out - ref_bf16)) < 2e-3
        # loose check vs. the exact f32 semantics of the PyTorch module
        assert jnp.max(jnp.abs(out - ref_f32)) < 5e-2
        return out

    # main forward path: equivalent_func(a, x) with default f_type='last'
    run_and_check(fb_num=1, f_type='last')
    # fb_num > 1 branch (pre-fused feedback layers before the fused matmul)
    run_and_check(fb_num=2, f_type='last')
    # f_type='first' branch
    run_and_check(fb_num=1, f_type='first')

    # TODO(synk): snn_forward() / forward() are abstract stubs (`pass`) in the
    # reference module, and the BN save/restore helpers are pure bookkeeping;
    # only the equivalent-function path has defined compute semantics.
    print("KERNEL_OK")
</pallas_src>

<mosaic_0001>
module attributes {stable_mosaic.version = 11 : i64} {
  func.func @_equiv_func_kernel(%arg0: i32, %arg1: memref<128x128xf32, #tpu.memory_space<vmem>>, %arg2: memref<128x128xf32, #tpu.memory_space<vmem>>, %arg3: memref<128x128xbf16, #tpu.memory_space<vmem>>, %arg4: memref<8x128xf32, #tpu.memory_space<vmem>>, %arg5: memref<128x128xbf16, #tpu.memory_space<vmem>>, %arg6: memref<8x128xf32, #tpu.memory_space<vmem>>, %arg7: memref<256x128xbf16, #tpu.memory_space<vmem>>, %arg8: memref<8x128xf32, #tpu.memory_space<vmem>>, %arg9: memref<128x128xf32, #tpu.memory_space<vmem>>) attributes {dimension_semantics = [#tpu.dimension_semantics<parallel>], iteration_bounds = array<i64: 2>, scalar_prefetch = 0 : i64, scratch_operands = 0 : i64, tpu.core_type = #tpu.core_type<tc>, window_params = [{transform_indices = @transform_0, window_bounds = array<i64: 128, 128>}, {transform_indices = @transform_1, window_bounds = array<i64: 128, 128>}, {pipeline_mode = #tpu.pipeline_mode<synchronous>, transform_indices = @transform_2, window_bounds = array<i64: 128, 128>}, {pipeline_mode = #tpu.pipeline_mode<synchronous>, transform_indices = @transform_3, window_bounds = array<i64: 8, 128>}, {pipeline_mode = #tpu.pipeline_mode<synchronous>, transform_indices = @transform_4, window_bounds = array<i64: 128, 128>}, {pipeline_mode = #tpu.pipeline_mode<synchronous>, transform_indices = @transform_5, window_bounds = array<i64: 8, 128>}, {pipeline_mode = #tpu.pipeline_mode<synchronous>, transform_indices = @transform_6, window_bounds = array<i64: 256, 128>}, {pipeline_mode = #tpu.pipeline_mode<synchronous>, transform_indices = @transform_7, window_bounds = array<i64: 8, 128>}, {transform_indices = @transform_8, window_bounds = array<i64: 128, 128>}]} {
    %c0 = arith.constant 0 : index
    %c0_0 = arith.constant 0 : index
    %0 = vector.load %arg1[%c0, %c0_0] : memref<128x128xf32, #tpu.memory_space<vmem>>, vector<128x128xf32>
    %1 = arith.truncf %0 : vector<128x128xf32> to vector<128x128xbf16>
    %c0_1 = arith.constant 0 : index
    %c0_2 = arith.constant 0 : index
    %2 = vector.load %arg2[%c0_1, %c0_2] : memref<128x128xf32, #tpu.memory_space<vmem>>, vector<128x128xf32>
    %3 = arith.truncf %2 : vector<128x128xf32> to vector<128x128xbf16>
    %4 = tpu.concatenate %1, %3 in 1 : vector<128x128xbf16>, vector<128x128xbf16> -> vector<128x256xbf16>
    %c0_3 = arith.constant 0 : index
    %c0_4 = arith.constant 0 : index
    %5 = vector.load %arg7[%c0_3, %c0_4] : memref<256x128xbf16, #tpu.memory_space<vmem>>, vector<256x128xbf16>
    %cst = arith.constant dense<0.000000e+00> : vector<128x128xf32>
    %6 = tpu.matmul %4, %5, %cst {dimension_numbers = #tpu.dot_dimension_numbers<[1], [0], [0], [1], [0, 0, 1, 1], [], []>} : vector<128x256xbf16>, vector<256x128xbf16>, vector<128x128xf32> -> vector<128x128xf32>
    %c0_5 = arith.constant 0 : index
    %c0_6 = arith.constant 0 : index
    %7 = vector.load %arg8[%c0_5, %c0_6] : memref<8x128xf32, #tpu.memory_space<vmem>>, vector<1x128xf32>
    %8 = vector.broadcast %7 : vector<1x128xf32> to vector<128x128xf32>
    %9 = arith.addf %6, %8 : vector<128x128xf32>
    %cst_7 = arith.constant 0.666666686 : f32
    %10 = vector.broadcast %cst_7 : f32 to vector<128x128xf32>
    %11 = arith.mulf %9, %10 : vector<128x128xf32>
    %cst_8 = arith.constant 0.000000e+00 : f32
    %cst_9 = arith.constant 1.000000e+00 : f32
    %12 = vector.broadcast %cst_8 : f32 to vector<128x128xf32>
    %13 = arith.maximumf %12, %11 : vector<128x128xf32>
    %14 = vector.broadcast %cst_9 : f32 to vector<128x128xf32>
    %15 = arith.minimumf %14, %13 : vector<128x128xf32>
    %c0_10 = arith.constant 0 : index
    %c0_11 = arith.constant 0 : index
    %16 = vector.load %arg3[%c0_10, %c0_11] : memref<128x128xbf16, #tpu.memory_space<vmem>>, vector<128x128xbf16>
    %c0_12 = arith.constant 0 : index
    %c0_13 = arith.constant 0 : index
    %17 = vector.load %arg4[%c0_12, %c0_13] : memref<8x128xf32, #tpu.memory_space<vmem>>, vector<1x128xf32>
    %18 = arith.truncf %15 : vector<128x128xf32> to vector<128x128xbf16>
    %cst_14 = arith.constant dense<0.000000e+00> : vector<128x128xf32>
    %19 = tpu.matmul %18, %16, %cst_14 {dimension_numbers = #tpu.dot_dimension_numbers<[1], [0], [0], [1], [0, 0, 1, 1], [], []>} : vector<128x128xbf16>, vector<128x128xbf16>, vector<128x128xf32> -> vector<128x128xf32>
    %20 = vector.broadcast %17 : vector<1x128xf32> to vector<128x128xf32>
    %21 = arith.addf %19, %20 : vector<128x128xf32>
    %cst_15 = arith.constant 0.666666686 : f32
    %22 = vector.broadcast %cst_15 : f32 to vector<128x128xf32>
    %23 = arith.mulf %21, %22 : vector<128x128xf32>
    %cst_16 = arith.constant 0.000000e+00 : f32
    %cst_17 = arith.constant 1.000000e+00 : f32
    %24 = vector.broadcast %cst_16 : f32 to vector<128x128xf32>
    %25 = arith.maximumf %24, %23 : vector<128x128xf32>
    %26 = vector.broadcast %cst_17 : f32 to vector<128x128xf32>
    %27 = arith.minimumf %26, %25 : vector<128x128xf32>
    %c0_18 = arith.constant 0 : index
    %c0_19 = arith.constant 0 : index
    %28 = vector.load %arg5[%c0_18, %c0_19] : memref<128x128xbf16, #tpu.memory_space<vmem>>, vector<128x128xbf16>
    %c0_20 = arith.constant 0 : index
    %c0_21 = arith.constant 0 : index
    %29 = vector.load %arg6[%c0_20, %c0_21] : memref<8x128xf32, #tpu.memory_space<vmem>>, vector<1x128xf32>
    %30 = arith.truncf %27 : vector<128x128xf32> to vector<128x128xbf16>
    %cst_22 = arith.constant dense<0.000000e+00> : vector<128x128xf32>
    %31 = tpu.matmul %30, %28, %cst_22 {dimension_numbers = #tpu.dot_dimension_numbers<[1], [0], [0], [1], [0, 0, 1, 1], [], []>} : vector<128x128xbf16>, vector<128x128xbf16>, vector<128x128xf32> -> vector<128x128xf32>
    %32 = vector.broadcast %29 : vector<1x128xf32> to vector<128x128xf32>
    %33 = arith.addf %31, %32 : vector<128x128xf32>
    %cst_23 = arith.constant 0.666666686 : f32
    %34 = vector.broadcast %cst_23 : f32 to vector<128x128xf32>
    %35 = arith.mulf %33, %34 : vector<128x128xf32>
    %cst_24 = arith.constant 0.000000e+00 : f32
    %cst_25 = arith.constant 1.000000e+00 : f32
    %36 = vector.broadcast %cst_24 : f32 to vector<128x128xf32>
    %37 = arith.maximumf %36, %35 : vector<128x128xf32>
    %38 = vector.broadcast %cst_25 : f32 to vector<128x128xf32>
    %39 = arith.minimumf %38, %37 : vector<128x128xf32>
    %c0_26 = arith.constant 0 : index
    %c0_27 = arith.constant 0 : index
    %40 = vector.load %arg9[%c0_26, %c0_27] : memref<128x128xf32, #tpu.memory_space<vmem>>, vector<128x128xf32>
    tpu.vector_store %arg9[%c0_26, %c0_27], %39 {strides = array<i32>} : memref<128x128xf32, #tpu.memory_space<vmem>>, vector<128x128xf32>,
    return
  }
  func.func @transform_0(%arg0: i32) -> (i32, i32) {
    %c0_i32 = arith.constant 0 : i32
    %c0_i32_0 = arith.constant 0 : i32
    return %arg0, %c0_i32 : i32, i32
  }
  func.func @transform_1(%arg0: i32) -> (i32, i32) {
    %c0_i32 = arith.constant 0 : i32
    %c0_i32_0 = arith.constant 0 : i32
    return %arg0, %c0_i32 : i32, i32
  }
  func.func @transform_2(%arg0: i32) -> (i32, i32) {
    %c0_i32 = arith.constant 0 : i32
    %c0_i32_0 = arith.constant 0 : i32
    %c0_i32_1 = arith.constant 0 : i32
    return %c0_i32, %c0_i32_0 : i32, i32
  }
  func.func @transform_3(%arg0: i32) -> (i32, i32) {
    %c0_i32 = arith.constant 0 : i32
    %c0_i32_0 = arith.constant 0 : i32
    %c0_i32_1 = arith.constant 0 : i32
    return %c0_i32, %c0_i32_0 : i32, i32
  }
  func.func @transform_4(%arg0: i32) -> (i32, i32) {
    %c0_i32 = arith.constant 0 : i32
    %c0_i32_0 = arith.constant 0 : i32
    %c0_i32_1 = arith.constant 0 : i32
    return %c0_i32, %c0_i32_0 : i32, i32
  }
  func.func @transform_5(%arg0: i32) -> (i32, i32) {
    %c0_i32 = arith.constant 0 : i32
    %c0_i32_0 = arith.constant 0 : i32
    %c0_i32_1 = arith.constant 0 : i32
    return %c0_i32, %c0_i32_0 : i32, i32
  }
  func.func @transform_6(%arg0: i32) -> (i32, i32) {
    %c0_i32 = arith.constant 0 : i32
    %c0_i32_0 = arith.constant 0 : i32
    %c0_i32_1 = arith.constant 0 : i32
    return %c0_i32, %c0_i32_0 : i32, i32
  }
  func.func @transform_7(%arg0: i32) -> (i32, i32) {
    %c0_i32 = arith.constant 0 : i32
    %c0_i32_0 = arith.constant 0 : i32
    %c0_i32_1 = arith.constant 0 : i32
    return %c0_i32, %c0_i32_0 : i32, i32
  }
  func.func @transform_8(%arg0: i32) -> (i32, i32) {
    %c0_i32 = arith.constant 0 : i32
    %c0_i32_0 = arith.constant 0 : i32
    return %arg0, %c0_i32 : i32, i32
  }
}

</mosaic_0001>

<llo_original>
// kernel: tpu_custom_call.1
$region0: #{tpu_custom_call.1}
  #allocation0 [shape = 'u32[]', space=smem, size = 0x4, offset = 0x4, fixed_abs, tag = 'smem constant byte address 0x4 - core index']
  #allocation1 [shape = 'u32[144,128]{1,0:T(1,128)}', space=vmem, size = 0x12000, scoped, tag = 'internal scratch']
  %s0 = inlined_call_operand.hbm [shape: f32[256,128], index: 0, kind: input, shape index: {}]
  %s1 = inlined_call_operand.hbm [shape: f32[256,128], index: 1, kind: input, shape index: {}]
  %s2 = inlined_call_operand.hbm [shape: bf16[128,128], index: 2, kind: input, shape index: {}]
  %s3 = inlined_call_operand.vmem [shape: f32[8,128], index: 3, kind: input, shape index: {}]
  %s4 = inlined_call_operand.hbm [shape: bf16[128,128], index: 4, kind: input, shape index: {}]
  %s5 = inlined_call_operand.vmem [shape: f32[8,128], index: 5, kind: input, shape index: {}]
  %s6 = inlined_call_operand.hbm [shape: bf16[256,128], index: 6, kind: input, shape index: {}]
  %s7 = inlined_call_operand.vmem [shape: f32[8,128], index: 7, kind: input, shape index: {}]
  %s8 = inlined_call_operand.hbm [shape: f32[256,128], index: 8, kind: output, shape index: {}]
  %s9 = sld [smem:[#allocation0]]
  $region85: #{tpu_custom_call.1} parent=0
    _
  %s11 = ssub.s32 1, %s9
  %s12 = scalar_select 0, %s11, %s9
  $region1: #{tpu_custom_call.1} parent=0
    #allocation2 [shape = 'u8[131072]{0}', space=vmem, size = 0x20000, scoped, tag = 'input window, operand 0']
    #allocation3 [shape = 's32[2]{0}', space=sflag, size = 0x8, scoped, tag = 'scoped memory for tpu_custom_call.1']
    #allocation4 [shape = 's32[2]{0}', space=sflag, size = 0x8, scoped, tag = 'scoped memory for tpu_custom_call.1']
    #allocation5 [shape = 'u8[131072]{0}', space=vmem, size = 0x20000, scoped, tag = 'input window, operand 1']
    #allocation6 [shape = 's32[2]{0}', space=sflag, size = 0x8, scoped, tag = 'scoped memory for tpu_custom_call.1']
    #allocation7 [shape = 'u8[32768]{0}', space=vmem, size = 0x8000, scoped, tag = 'input window, operand 2, single buffered']
    #allocation8 [shape = 'u8[32768]{0}', space=vmem, size = 0x8000, scoped, tag = 'input window, operand 4, single buffered']
    #allocation9 [shape = 's32[1]{0}', space=sflag, size = 0x4, scoped, tag = 'scoped memory for tpu_custom_call.1']
    #allocation10 [shape = 'u8[65536]{0}', space=vmem, size = 0x10000, scoped, tag = 'input window, operand 6, single buffered']
    #allocation11 [shape = 'u8[131072]{0}', space=vmem, size = 0x20000, scoped, tag = 'output window, operand 0']
    %13 = vsyncpa [#allocation3], 0
    %s14 = scalar_lea.sflag [#allocation3], 1
    %15 = vsyncpa %s14, 0
    %16 = vsyncpa [#allocation6], 0
    %s17 = scalar_lea.sflag [#allocation6], 1
    %18 = vsyncpa %s17, 0
    %19 = vsyncpa [#allocation9], 0
    %20 = vsyncpa [#allocation4], 0
    %s21 = scalar_lea.sflag [#allocation4], 1
    %22 = vsyncpa %s21, 0
    loop: start=0, step=1, limit=4
    $region2: #{tpu_custom_call.1} parent=1 // loop_pre_header
      _
    $region3: #{tpu_custom_call.1} parent=1 // loop_header
      %s24 = sphi 0, %s28
      %p25 = scmp.ge.s32.totalorder %s24, 4
      %s34 = sphi 0, %s36
      %s37 = sphi 0, %s34
      %s38 = sphi 0, %s37
      %s54 = sphi 0, %s38
      %s60 = sphi 0, %s62
      %s63 = sphi 0, %s60
      %s64 = sphi 0, %s63
      %s80 = sphi 0, %s64
      %s84 = sphi 0, %s84
      %s86 = sphi 0, %s84
      %s87 = sphi 0, %s86
      %s101 = sphi 0, %s87
      %s105 = sphi 0, %s105
      %s107 = sphi 0, %s105
      %s108 = sphi 0, %s107
      %s122 = sphi 0, %s108
      %s126 = sphi 0, %s126
      %s128 = sphi 0, %s126
      %s129 = sphi 0, %s128
      %s143 = sphi 0, %s129
      %s147 = sphi 0, %s147
      %s149 = sphi 0, %s147
      %s150 = sphi 0, %s149
      %s164 = sphi 0, %s150
      %s168 = sphi 0, %s168
      %s170 = sphi 0, %s168
      %s171 = sphi 0, %s170
      %s185 = sphi 0, %s171
      %s189 = sphi 0, %s189
      %s191 = sphi 0, %s189
      %s192 = sphi 0, %s191
      %s206 = sphi 0, %s192
      %s212 = sphi 0, %s214
      %s215 = sphi 0, %s212
      %s216 = sphi 0, %s215
      %s232 = sphi 0, %s216
    $region4: #{tpu_custom_call.1} parent=1 // loop_header_branch
      %27 = sbr.rel (%p25) target = $region8
    $region5: #{tpu_custom_call.1} parent=1 // loop_body
      %s29 = ssub.s32 %s24, 1
      %s30 = ssub.s32 %s24, 2
      %s31 = sadd.s32 %s24, 1
      %s32 = ssub.s32 %s24, %s31
      %p33 = scmp.eq.s32.totalorder %s32, 0
      %s35 = sadd.s32 %s34, 1
      %s36 = scalar_select %p33, %s34, %s35
      %p39 = pneg %p33
      %p40 = scmp.eq.s32.totalorder %s24, 1
      %p41 = por %p39, %p40
      %p42 = scmp.ne.s32.totalorder %s34, %s37
      %p43 = scmp.eq.s32.totalorder %s24, 0
      %p44 = por %p42, %p43
      %p45 = scmp.ne.s32.totalorder %s34, %s37
      %p46 = scmp.eq.s32.totalorder %s29, 1
      %p47 = por %p45, %p46
      %p48 = scmp.ne.s32.totalorder %s37, %s38
      %p49 = scmp.eq.s32.totalorder %s29, 0
      %p50 = por %p48, %p49
      %p51 = scmp.ne.s32.totalorder %s37, %s38
      %p52 = scmp.eq.s32.totalorder %s30, 1
      %p53 = por %p51, %p52
      %p55 = scmp.ne.s32.totalorder %s38, %s54
      %p56 = scmp.eq.s32.totalorder %s30, 0
      %p57 = por %p55, %p56
      %s58 = ssub.s32 %s24, %s31
      %p59 = scmp.eq.s32.totalorder %s58, 0
      %s61 = sadd.s32 %s60, 1
      %s62 = scalar_select %p59, %s60, %s61
      %p65 = pneg %p59
      %p66 = scmp.eq.s32.totalorder %s24, 1
      %p67 = por %p65, %p66
      %p68 = scmp.ne.s32.totalorder %s60, %s63
      %p69 = scmp.eq.s32.totalorder %s24, 0
      %p70 = por %p68, %p69
      %p71 = scmp.ne.s32.totalorder %s60, %s63
      %p72 = scmp.eq.s32.totalorder %s29, 1
      %p73 = por %p71, %p72
      %p74 = scmp.ne.s32.totalorder %s63, %s64
      %p75 = scmp.eq.s32.totalorder %s29, 0
      %p76 = por %p74, %p75
      %p77 = scmp.ne.s32.totalorder %s63, %s64
      %p78 = scmp.eq.s32.totalorder %s30, 1
      %p79 = por %p77, %p78
      %p81 = scmp.ne.s32.totalorder %s64, %s80
      %p82 = scmp.eq.s32.totalorder %s30, 0
      %p83 = por %p81, %p82
      %s85 = sadd.s32 %s84, 1
      %p88 = scmp.eq.s32.totalorder %s24, 1
      %p89 = scmp.ne.s32.totalorder %s84, %s86
      %p90 = scmp.eq.s32.totalorder %s24, 0
      %p91 = por %p89, %p90
      %p92 = scmp.ne.s32.totalorder %s84, %s86
      %p93 = scmp.eq.s32.totalorder %s29, 1
      %p94 = por %p92, %p93
      %p95 = scmp.ne.s32.totalorder %s86, %s87
      %p96 = scmp.eq.s32.totalorder %s29, 0
      %p97 = por %p95, %p96
      %p98 = scmp.ne.s32.totalorder %s86, %s87
      %p99 = scmp.eq.s32.totalorder %s30, 1
      %p100 = por %p98, %p99
      %p102 = scmp.ne.s32.totalorder %s87, %s101
      %p103 = scmp.eq.s32.totalorder %s30, 0
      %p104 = por %p102, %p103
      %s106 = sadd.s32 %s105, 1
      %p109 = scmp.eq.s32.totalorder %s24, 1
      %p110 = scmp.ne.s32.totalorder %s105, %s107
      %p111 = scmp.eq.s32.totalorder %s24, 0
      %p112 = por %p110, %p111
      %p113 = scmp.ne.s32.totalorder %s105, %s107
      %p114 = scmp.eq.s32.totalorder %s29, 1
      %p115 = por %p113, %p114
      %p116 = scmp.ne.s32.totalorder %s107, %s108
      %p117 = scmp.eq.s32.totalorder %s29, 0
      %p118 = por %p116, %p117
      %p119 = scmp.ne.s32.totalorder %s107, %s108
      %p120 = scmp.eq.s32.totalorder %s30, 1
      %p121 = por %p119, %p120
      %p123 = scmp.ne.s32.totalorder %s108, %s122
      %p124 = scmp.eq.s32.totalorder %s30, 0
      %p125 = por %p123, %p124
      %s127 = sadd.s32 %s126, 1
      %p130 = scmp.eq.s32.totalorder %s24, 1
      %p131 = scmp.ne.s32.totalorder %s126, %s128
      %p132 = scmp.eq.s32.totalorder %s24, 0
      %p133 = por %p131, %p132
      %p134 = scmp.ne.s32.totalorder %s126, %s128
      %p135 = scmp.eq.s32.totalorder %s29, 1
      %p136 = por %p134, %p135
      %p137 = scmp.ne.s32.totalorder %s128, %s129
      %p138 = scmp.eq.s32.totalorder %s29, 0
      %p139 = por %p137, %p138
      %p140 = scmp.ne.s32.totalorder %s128, %s129
      %p141 = scmp.eq.s32.totalorder %s30, 1
      %p142 = por %p140, %p141
      %p144 = scmp.ne.s32.totalorder %s129, %s143
      %p145 = scmp.eq.s32.totalorder %s30, 0
      %p146 = por %p144, %p145
      %s148 = sadd.s32 %s147, 1
      %p151 = scmp.eq.s32.totalorder %s24, 1
      %p152 = scmp.ne.s32.totalorder %s147, %s149
      %p153 = scmp.eq.s32.totalorder %s24, 0
      %p154 = por %p152, %p153
      %p155 = scmp.ne.s32.totalorder %s147, %s149
      %p156 = scmp.eq.s32.totalorder %s29, 1
      %p157 = por %p155, %p156
      %p158 = scmp.ne.s32.totalorder %s149, %s150
      %p159 = scmp.eq.s32.totalorder %s29, 0
      %p160 = por %p158, %p159
      %p161 = scmp.ne.s32.totalorder %s149, %s150
      %p162 = scmp.eq.s32.totalorder %s30, 1
      %p163 = por %p161, %p162
      %p165 = scmp.ne.s32.totalorder %s150, %s164
      %p166 = scmp.eq.s32.totalorder %s30, 0
      %p167 = por %p165, %p166
      %s169 = sadd.s32 %s168, 1
      %p172 = scmp.eq.s32.totalorder %s24, 1
      %p173 = scmp.ne.s32.totalorder %s168, %s170
      %p174 = scmp.eq.s32.totalorder %s24, 0
      %p175 = por %p173, %p174
      %p176 = scmp.ne.s32.totalorder %s168, %s170
      %p177 = scmp.eq.s32.totalorder %s29, 1
      %p178 = por %p176, %p177
      %p179 = scmp.ne.s32.totalorder %s170, %s171
      %p180 = scmp.eq.s32.totalorder %s29, 0
      %p181 = por %p179, %p180
      %p182 = scmp.ne.s32.totalorder %s170, %s171
      %p183 = scmp.eq.s32.totalorder %s30, 1
      %p184 = por %p182, %p183
      %p186 = scmp.ne.s32.totalorder %s171, %s185
      %p187 = scmp.eq.s32.totalorder %s30, 0
      %p188 = por %p186, %p187
      %s190 = sadd.s32 %s189, 1
      %p193 = scmp.eq.s32.totalorder %s24, 1
      %p194 = scmp.ne.s32.totalorder %s189, %s191
      %p195 = scmp.eq.s32.totalorder %s24, 0
      %p196 = por %p194, %p195
      %p197 = scmp.ne.s32.totalorder %s189, %s191
      %p198 = scmp.eq.s32.totalorder %s29, 1
      %p199 = por %p197, %p198
      %p200 = scmp.ne.s32.totalorder %s191, %s192
      %p201 = scmp.eq.s32.totalorder %s29, 0
      %p202 = por %p200, %p201
      %p203 = scmp.ne.s32.totalorder %s191, %s192
      %p204 = scmp.eq.s32.totalorder %s30, 1
      %p205 = por %p203, %p204
      %p207 = scmp.ne.s32.totalorder %s192, %s206
      %p208 = scmp.eq.s32.totalorder %s30, 0
      %p209 = por %p207, %p208
      %s210 = ssub.s32 %s24, %s31
      %p211 = scmp.eq.s32.totalorder %s210, 0
      %s213 = sadd.s32 %s212, 1
      %s214 = scalar_select %p211, %s212, %s213
      %p217 = pneg %p211
      %p218 = scmp.eq.s32.totalorder %s24, 1
      %p219 = por %p217, %p218
      %p220 = scmp.ne.s32.totalorder %s212, %s215
      %p221 = scmp.eq.s32.totalorder %s24, 0
      %p222 = por %p220, %p221
      %p223 = scmp.ne.s32.totalorder %s212, %s215
      %p224 = scmp.eq.s32.totalorder %s29, 1
      %p225 = por %p223, %p224
      %p226 = scmp.ne.s32.totalorder %s215, %s216
      %p227 = scmp.eq.s32.totalorder %s29, 0
      %p228 = por %p226, %p227
      %p229 = scmp.ne.s32.totalorder %s215, %s216
      %p230 = scmp.eq.s32.totalorder %s30, 1
      %p231 = por %p229, %p230
      %p233 = scmp.ne.s32.totalorder %s216, %s232
      %p234 = scmp.eq.s32.totalorder %s30, 0
      %p235 = por %p233, %p234
      %p236 = scmp.le.s32.totalorder 1, %s24
      %p237 = scmp.lt.s32.totalorder %s24, 3
      %p238 = pnand %p236, %p237
      %p239 = pneg %p238
      // Predicated region
      $region9: #{tpu_custom_call.1} parent=5 // pred_check
        _
      $region10: #{tpu_custom_call.1} parent=5 // pred_check_branch
        %241 = sbr.rel (%p238) target = $region12
      $region11: #{tpu_custom_call.1} parent=5 // pred_region
        %s242 = ssub.s32 %s24, 1
        // Predicated region
        $region13: #{tpu_custom_call.1} parent=11 // pred_check
          %p243 = pneg %p97
        $region14: #{tpu_custom_call.1} parent=11 // pred_check_branch
          %245 = sbr.rel (%p243) target = $region16
        $region15: #{tpu_custom_call.1} parent=11 // pred_region
          %s247 = ssub.s32 1024, 1024
          %248 = vsyncadd [#allocation6], %s247
          %s249 = sshll.u32 [#allocation7], 4
          %s250 = int_to_ptr.vmem [resolvable:$true] %s249
          %255 = dma.hbm_to_vmem [thread:$0]  %s2, 1024, %s250, [#allocation6], 64, 64, 4
        $region16: #{tpu_custom_call.1} parent=11 // pred_fallthru
          _
        // Predicated region
        $region17: #{tpu_custom_call.1} parent=11 // pred_check
          %p256 = pneg %p118
        $region18: #{tpu_custom_call.1} parent=11 // pred_check_branch
          %258 = sbr.rel (%p256) target = $region20
        $region19: #{tpu_custom_call.1} parent=11 // pred_region
          _
        $region20: #{tpu_custom_call.1} parent=11 // pred_fallthru
          _
        // Predicated region
        $region21: #{tpu_custom_call.1} parent=11 // pred_check
          %p259 = pneg %p139
        $region22: #{tpu_custom_call.1} parent=11 // pred_check_branch
          %261 = sbr.rel (%p259) target = $region24
        $region23: #{tpu_custom_call.1} parent=11 // pred_region
          %s263 = ssub.s32 1024, 1024
          %264 = vsyncadd [#allocation9], %s263
          %s265 = sshll.u32 [#allocation8], 4
          %s266 = int_to_ptr.vmem [resolvable:$true] %s265
          %271 = dma.hbm_to_vmem [thread:$0]  %s4, 1024, %s266, [#allocation9], 64, 64, 4
        $region24: #{tpu_custom_call.1} parent=11 // pred_fallthru
          _
        // Predicated region
        $region25: #{tpu_custom_call.1} parent=11 // pred_check
          %p272 = pneg %p160
        $region26: #{tpu_custom_call.1} parent=11 // pred_check_branch
          %274 = sbr.rel (%p272) target = $region28
        $region27: #{tpu_custom_call.1} parent=11 // pred_region
          _
        $region28: #{tpu_custom_call.1} parent=11 // pred_fallthru
          _
        // Predicated region
        $region29: #{tpu_custom_call.1} parent=11 // pred_check
          %p275 = pneg %p181
        $region30: #{tpu_custom_call.1} parent=11 // pred_check_branch
          %277 = sbr.rel (%p275) target = $region32
        $region31: #{tpu_custom_call.1} parent=11 // pred_region
          %s279 = ssub.s32 2048, 2048
          %280 = vsyncadd [#allocation9], %s279
          %s281 = sshll.u32 [#allocation10], 4
          %s282 = int_to_ptr.vmem [resolvable:$true] %s281
          %287 = dma.hbm_to_vmem [thread:$0]  %s6, 2048, %s282, [#allocation9], 64, 64, 4
        $region32: #{tpu_custom_call.1} parent=11 // pred_fallthru
          _
        // Predicated region
        $region33: #{tpu_custom_call.1} parent=11 // pred_check
          %p288 = pneg %p202
        $region34: #{tpu_custom_call.1} parent=11 // pred_check_branch
          %290 = sbr.rel (%p288) target = $region36
        $region35: #{tpu_custom_call.1} parent=11 // pred_region
          _
        $region36: #{tpu_custom_call.1} parent=11 // pred_fallthru
          _
      $region12: #{tpu_custom_call.1} parent=5 // pred_fallthru
        _
      %p291 = scmp.lt.s32.totalorder %s24, 2
      // Predicated region
      $region37: #{tpu_custom_call.1} parent=5 // pred_check
        %p292 = pneg %p291
      $region38: #{tpu_custom_call.1} parent=5 // pred_check_branch
        %294 = sbr.rel (%p292) target = $region40
      $region39: #{tpu_custom_call.1} parent=5 // pred_region
        // Predicated region
        $region41: #{tpu_custom_call.1} parent=39 // pred_check
          %p295 = pneg %p44
        $region42: #{tpu_custom_call.1} parent=39 // pred_check_branch
          %297 = sbr.rel (%p295) target = $region44
        $region43: #{tpu_custom_call.1} parent=39 // pred_region
          %s298 = sand.u32 %s34, 1
          %s299 = scalar_lea.sflag [#allocation3], %s298
          %s300 = sand.u32 %s34, 1
          %s301 = smul.addr %s300, 128
          %s302 = scalar_lea.vmem [#allocation2], %s301
          %s303 = smul.u32 16, %s24
          %s305 = ssub.s32 2048, 2048
          %306 = vsyncadd %s299, %s305
          %s307 = smul.addr %s303, 128
          %s308 = scalar_lea.hbm %s0, %s307
          %s309 = sshll.u32 %s302, 4
          %s310 = int_to_ptr.vmem [resolvable:$true] %s309
          %315 = dma.hbm_to_vmem [thread:$0]  %s308, 2048, %s310, %s299, 128, 128, 8
        $region44: #{tpu_custom_call.1} parent=39 // pred_fallthru
          _
        // Predicated region
        $region45: #{tpu_custom_call.1} parent=39 // pred_check
          %p316 = pneg %p70
        $region46: #{tpu_custom_call.1} parent=39 // pred_check_branch
          %318 = sbr.rel (%p316) target = $region48
        $region47: #{tpu_custom_call.1} parent=39 // pred_region
          %s319 = sand.u32 %s24, 1
          %s320 = scalar_lea.sflag [#allocation6], %s319
          %s321 = sand.u32 %s60, 1
          %s322 = smul.addr %s321, 128
          %s323 = scalar_lea.vmem [#allocation5], %s322
          %s324 = smul.u32 16, %s24
          %s326 = ssub.s32 2048, 2048
          %327 = vsyncadd %s320, %s326
          %s328 = smul.addr %s324, 128
          %s329 = scalar_lea.hbm %s1, %s328
          %s330 = sshll.u32 %s323, 4
          %s331 = int_to_ptr.vmem [resolvable:$true] %s330
          %336 = dma.hbm_to_vmem [thread:$0]  %s329, 2048, %s331, %s320, 128, 128, 8
        $region48: #{tpu_custom_call.1} parent=39 // pred_fallthru
          _
      $region40: #{tpu_custom_call.1} parent=5 // pred_fallthru
        _
      %p337 = scmp.le.s32.totalorder 1, %s24
      %p338 = scmp.lt.s32.totalorder %s24, 3
      %p339 = pnand %p337, %p338
      %p340 = pneg %p339
      // Predicated region
      $region49: #{tpu_custom_call.1} parent=5 // pred_check
        _
      $region50: #{tpu_custom_call.1} parent=5 // pred_check_branch
        %342 = sbr.rel (%p339) target = $region52
      $region51: #{tpu_custom_call.1} parent=5 // pred_region
        %s343 = ssub.s32 %s24, 1
        %s344 = sand.u32 %s37, 1
        %s345 = scalar_lea.sflag [#allocation3], %s344
        %s346 = sand.u32 %s37, 1
        %s347 = smul.addr %s346, 128
        %s348 = scalar_lea.vmem [#allocation2], %s347
        // Predicated region
        $region53: #{tpu_custom_call.1} parent=51 // pred_check
          %p349 = pneg %p50
        $region54: #{tpu_custom_call.1} parent=51 // pred_check_branch
          %351 = sbr.rel (%p349) target = $region56
        $region55: #{tpu_custom_call.1} parent=51 // pred_region
          %352 = dma.done %s345, 2048
        $region56: #{tpu_custom_call.1} parent=51 // pred_fallthru
          _
        %s353 = sand.u32 %s29, 1
        %s354 = scalar_lea.sflag [#allocation6], %s353
        %s355 = sand.u32 %s63, 1
        %s356 = smul.addr %s355, 128
        %s357 = scalar_lea.vmem [#allocation5], %s356
        // Predicated region
        $region57: #{tpu_custom_call.1} parent=51 // pred_check
          %p358 = pneg %p76
        $region58: #{tpu_custom_call.1} parent=51 // pred_check_branch
          %360 = sbr.rel (%p358) target = $region60
        $region59: #{tpu_custom_call.1} parent=51 // pred_region
          %361 = dma.done %s354, 2048
        $region60: #{tpu_custom_call.1} parent=51 // pred_fallthru
          _
        // Predicated region
        $region61: #{tpu_custom_call.1} parent=51 // pred_check
          %p362 = pneg %p97
        $region62: #{tpu_custom_call.1} parent=51 // pred_check_branch
          %364 = sbr.rel (%p362) target = $region64
        $region63: #{tpu_custom_call.1} parent=51 // pred_region
          %365 = dma.done [#allocation6], 1024
        $region64: #{tpu_custom_call.1} parent=51 // pred_fallthru
          _
        // Predicated region
        $region65: #{tpu_custom_call.1} parent=51 // pred_check
          %p366 = pneg %p139
        $region66: #{tpu_custom_call.1} parent=51 // pred_check_branch
          %368 = sbr.rel (%p366) target = $region68
        $region67: #{tpu_custom_call.1} parent=51 // pred_region
          %369 = dma.done [#allocation9], 1024
        $region68: #{tpu_custom_call.1} parent=51 // pred_fallthru
          _
        // Predicated region
        $region69: #{tpu_custom_call.1} parent=51 // pred_check
          %p370 = pneg %p181
        $region70: #{tpu_custom_call.1} parent=51 // pred_check_branch
          %372 = sbr.rel (%p370) target = $region72
        $region71: #{tpu_custom_call.1} parent=51 // pred_region
          %373 = dma.done [#allocation9], 2048
        $region72: #{tpu_custom_call.1} parent=51 // pred_fallthru
          _
        %s374 = sand.u32 %s37, 1
        %s375 = scalar_lea.sflag [#allocation3], %s374
        %s376 = sand.u32 %s37, 1
        %s377 = smul.addr %s376, 128
        %s378 = scalar_lea.vmem [#allocation2], %s377
        %p379 = pneg %p50
        %p380 = pneg %p47
        %s381 = sand.u32 %s29, 1
        %s382 = scalar_lea.sflag [#allocation6], %s381
        %s383 = sand.u32 %s63, 1
        %s384 = smul.addr %s383, 128
        %s385 = scalar_lea.vmem [#allocation5], %s384
        %p386 = pneg %p76
        %p387 = pneg %p73
        %p388 = pneg %p97
        %p389 = pneg %p94
        %p390 = pneg %p118
        %p391 = pneg %p115
        %p392 = pneg %p139
        %p393 = pneg %p136
        %p394 = pneg %p160
        %p395 = pneg %p157
        %p396 = pneg %p181
        %p397 = pneg %p178
        %p398 = pneg %p202
        %p399 = pneg %p199
        %p400 = pneg %p228
        %p401 = pneg %p225
        %s402 = sand.u32 %s215, 1
        %s403 = scalar_lea.sflag [#allocation4], %s402
        %s404 = sand.u32 %s215, 1
        %s405 = smul.addr %s404, 128
        %s406 = scalar_lea.vmem [#allocation11], %s405
        %s407 = smul.u32 16, %s29
        %s408 = smul.u32 16, %s29
        %s409 = smul.u32 16, %s29
        %v411 = vld [vmem:[%s348] sm:$0xff]
        %v412 = vld [vmem:[%s348 + $0x8] sm:$0xff]
        %v413 = vld [vmem:[%s348 + $0x10] sm:$0xff]
        %v414 = vld [vmem:[%s348 + $0x18] sm:$0xff]
        %v415 = vld [vmem:[%s348 + $0x20] sm:$0xff]
        %v416 = vld [vmem:[%s348 + $0x28] sm:$0xff]
        %v417 = vld [vmem:[%s348 + $0x30] sm:$0xff]
        %v418 = vld [vmem:[%s348 + $0x38] sm:$0xff]
        %v419 = vld [vmem:[%s348 + $0x40] sm:$0xff]
        %v420 = vld [vmem:[%s348 + $0x48] sm:$0xff]
        %v421 = vld [vmem:[%s348 + $0x50] sm:$0xff]
        %v422 = vld [vmem:[%s348 + $0x58] sm:$0xff]
        %v423 = vld [vmem:[%s348 + $0x60] sm:$0xff]
        %v424 = vld [vmem:[%s348 + $0x68] sm:$0xff]
        %v425 = vld [vmem:[%s348 + $0x70] sm:$0xff]
        %v426 = vld [vmem:[%s348 + $0x78] sm:$0xff]
        %v427 = vpack.c.bf16 %v412, %v411
        %v428 = vpack.c.bf16 %v414, %v413
        %v429 = vpack.c.bf16 %v416, %v415
        %v430 = vpack.c.bf16 %v418, %v417
        %v431 = vpack.c.bf16 %v420, %v419
        %v432 = vpack.c.bf16 %v422, %v421
        %v433 = vpack.c.bf16 %v424, %v423
        %v434 = vpack.c.bf16 %v426, %v425
        %v435 = vld [vmem:[%s357] sm:$0xff]
        %v436 = vld [vmem:[%s357 + $0x8] sm:$0xff]
        %v437 = vld [vmem:[%s357 + $0x10] sm:$0xff]
        %v438 = vld [vmem:[%s357 + $0x18] sm:$0xff]
        %v439 = vld [vmem:[%s357 + $0x20] sm:$0xff]
        %v440 = vld [vmem:[%s357 + $0x28] sm:$0xff]
        %v441 = vld [vmem:[%s357 + $0x30] sm:$0xff]
        %v442 = vld [vmem:[%s357 + $0x38] sm:$0xff]
        %v443 = vld [vmem:[%s357 + $0x40] sm:$0xff]
        %v444 = vld [vmem:[%s357 + $0x48] sm:$0xff]
        %v445 = vld [vmem:[%s357 + $0x50] sm:$0xff]
        %v446 = vld [vmem:[%s357 + $0x58] sm:$0xff]
        %v447 = vld [vmem:[%s357 + $0x60] sm:$0xff]
        %v448 = vld [vmem:[%s357 + $0x68] sm:$0xff]
        %v449 = vld [vmem:[%s357 + $0x70] sm:$0xff]
        %v450 = vld [vmem:[%s357 + $0x78] sm:$0xff]
        %v451 = vpack.c.bf16 %v436, %v435
        %v452 = vpack.c.bf16 %v438, %v437
        %v453 = vpack.c.bf16 %v440, %v439
        %v454 = vpack.c.bf16 %v442, %v441
        %v455 = vpack.c.bf16 %v444, %v443
        %v456 = vpack.c.bf16 %v446, %v445
        %v457 = vpack.c.bf16 %v448, %v447
        %v458 = vpack.c.bf16 %v450, %v449
        %v459 = vld [vmem:[#allocation10] sm:$0xf]
        %v460 = vld [vmem:[#allocation10 + $0x4] sm:$0xf]
        %v461 = vld [vmem:[#allocation10 + $0x8] sm:$0xf]
        %v462 = vld [vmem:[#allocation10 + $0xc] sm:$0xf]
        %v463 = vld [vmem:[#allocation10 + $0x10] sm:$0xf]
        %v464 = vld [vmem:[#allocation10 + $0x14] sm:$0xf]
        %v465 = vld [vmem:[#allocation10 + $0x18] sm:$0xf]
        %v466 = vld [vmem:[#allocation10 + $0x1c] sm:$0xf]
        %v467 = vld [vmem:[#allocation10 + $0x20] sm:$0xf]
        %v468 = vld [vmem:[#allocation10 + $0x24] sm:$0xf]
        %v469 = vld [vmem:[#allocation10 + $0x28] sm:$0xf]
        %v470 = vld [vmem:[#allocation10 + $0x2c] sm:$0xf]
        %v471 = vld [vmem:[#allocation10 + $0x30] sm:$0xf]
        %v472 = vld [vmem:[#allocation10 + $0x34] sm:$0xf]
        %v473 = vld [vmem:[#allocation10 + $0x38] sm:$0xf]
        %v474 = vld [vmem:[#allocation10 + $0x3c] sm:$0xf]
        %v475 = vld [vmem:[#allocation10 + $0x40] sm:$0xf]
        %v476 = vld [vmem:[#allocation10 + $0x44] sm:$0xf]
        %v477 = vld [vmem:[#allocation10 + $0x48] sm:$0xf]
        %v478 = vld [vmem:[#allocation10 + $0x4c] sm:$0xf]
        %v479 = vld [vmem:[#allocation10 + $0x50] sm:$0xf]
        %v480 = vld [vmem:[#allocation10 + $0x54] sm:$0xf]
        %v481 = vld [vmem:[#allocation10 + $0x58] sm:$0xf]
        %v482 = vld [vmem:[#allocation10 + $0x5c] sm:$0xf]
        %v483 = vld [vmem:[#allocation10 + $0x60] sm:$0xf]
        %v484 = vld [vmem:[#allocation10 + $0x64] sm:$0xf]
        %v485 = vld [vmem:[#allocation10 + $0x68] sm:$0xf]
        %v486 = vld [vmem:[#allocation10 + $0x6c] sm:$0xf]
        %v487 = vld [vmem:[#allocation10 + $0x70] sm:$0xf]
        %v488 = vld [vmem:[#allocation10 + $0x74] sm:$0xf]
        %v489 = vld [vmem:[#allocation10 + $0x78] sm:$0xf]
        %v490 = vld [vmem:[#allocation10 + $0x7c] sm:$0xf]
        %v491 = vld [vmem:[%s7] sm:$0x1]
        %v492 = vlaneseq
        %v493 = vshrl.u32 %v492, 7
        %v494 = vsub.s32 0, %v493
        %v495 = vrot.slane %v491, %v494
        %v528 = vunpack.c.l.b16 %v459
        %v529 = vunpack.c.l.b16 %v460
        %v530 = vunpack.c.l.b16 %v461
        %v531 = vunpack.c.l.b16 %v462
        %v532 = vunpack.c.l.b16 %v463
        %v533 = vunpack.c.l.b16 %v464
        %v534 = vunpack.c.l.b16 %v465
        %v535 = vunpack.c.l.b16 %v466
        %v536 = vunpack.c.l.b16 %v467
        %v537 = vunpack.c.l.b16 %v468
        %v538 = vunpack.c.l.b16 %v469
        %v539 = vunpack.c.l.b16 %v470
        %v540 = vunpack.c.l.b16 %v471
        %v541 = vunpack.c.l.b16 %v472
        %v542 = vunpack.c.l.b16 %v473
        %v543 = vunpack.c.l.b16 %v474
        %v544 = vunpack.c.l.b16 %v475
        %v545 = vunpack.c.l.b16 %v476
        %v546 = vunpack.c.l.b16 %v477
        %v547 = vunpack.c.l.b16 %v478
        %v548 = vunpack.c.l.b16 %v479
        %v549 = vunpack.c.l.b16 %v480
        %v550 = vunpack.c.l.b16 %v481
        %v551 = vunpack.c.l.b16 %v482
        %v552 = vunpack.c.l.b16 %v483
        %v553 = vunpack.c.l.b16 %v484
        %v554 = vunpack.c.l.b16 %v485
        %v555 = vunpack.c.l.b16 %v486
        %v556 = vunpack.c.l.b16 %v487
        %v557 = vunpack.c.l.b16 %v488
        %v558 = vunpack.c.l.b16 %v489
        %v559 = vunpack.c.l.b16 %v490
        %v560 = vpack.c.b16 %v529, %v528
        %v561 = vpack.c.b16 %v531, %v530
        %v562 = vpack.c.b16 %v533, %v532
        %v563 = vpack.c.b16 %v535, %v534
        %v564 = vpack.c.b16 %v537, %v536
        %v565 = vpack.c.b16 %v539, %v538
        %v566 = vpack.c.b16 %v541, %v540
        %v567 = vpack.c.b16 %v543, %v542
        %v568 = vpack.c.b16 %v545, %v544
        %v569 = vpack.c.b16 %v547, %v546
        %v570 = vpack.c.b16 %v549, %v548
        %v571 = vpack.c.b16 %v551, %v550
        %v572 = vpack.c.b16 %v553, %v552
        %v573 = vpack.c.b16 %v555, %v554
        %v574 = vpack.c.b16 %v557, %v556
        %v575 = vpack.c.b16 %v559, %v558
        %592 = vmatprep.subr.bf16.mxu0 0
        %593 = vmatpush1.bf16.msra.mxu0 %v560
        %594 = vmatprep.subr.bf16.mxu0 0
        %595 = vmatpush1.bf16.msra.mxu0 %v561
        %596 = vmatprep.subr.bf16.mxu0 0
        %597 = vmatpush1.bf16.msra.mxu0 %v562
        %598 = vmatprep.subr.bf16.mxu0 0
        %599 = vmatpush1.bf16.msra.mxu0 %v563
        %600 = vmatprep.subr.bf16.mxu0 0
        %601 = vmatpush1.bf16.msra.mxu0 %v564
        %602 = vmatprep.subr.bf16.mxu0 0
        %603 = vmatpush1.bf16.msra.mxu0 %v565
        %604 = vmatprep.subr.bf16.mxu0 0
        %605 = vmatpush1.bf16.msra.mxu0 %v566
        %606 = vmatprep.subr.bf16.mxu0 0
        %607 = vmatpush1.bf16.msra.mxu0 %v567
        %608 = vmatprep.subr.bf16.mxu0 0
        %609 = vmatpush1.bf16.msra.mxu0 %v568
        %610 = vmatprep.subr.bf16.mxu0 0
        %611 = vmatpush1.bf16.msra.mxu0 %v569
        %612 = vmatprep.subr.bf16.mxu0 0
        %613 = vmatpush1.bf16.msra.mxu0 %v570
        %614 = vmatprep.subr.bf16.mxu0 0
        %615 = vmatpush1.bf16.msra.mxu0 %v571
        %616 = vmatprep.subr.bf16.mxu0 0
        %617 = vmatpush1.bf16.msra.mxu0 %v572
        %618 = vmatprep.subr.bf16.mxu0 0
        %619 = vmatpush1.bf16.msra.mxu0 %v573
        %620 = vmatprep.subr.bf16.mxu0 0
        %621 = vmatpush1.bf16.msra.mxu0 %v574
        %622 = vmatprep.subr.bf16.mxu0 0
        %623 = vmatpush1.bf16.msra.mxu0 %v575
        %624 = vmatprep.mubr.bf16.mxu0 %v451
        %625 = vmatmul.mubr.bf16.gmra.mrb[0].mxu0 %v427
        %v626 = vpop.f32.mrb[0].mxu0
        %v627 = vadd.f32 %v495, %v626
        %v628 = vpop.f32.mrb[0].mxu0
        %v629 = vpop.f32.mrb[0].mxu0
        %v630 = vadd.f32 %v495, %v629
        %v631 = vpop.f32.mrb[0].mxu0
        %632 = vmatprep.mubr.bf16.mxu0 %v452
        %633 = vmatmul.mubr.bf16.gmra.mrb[0].mxu0 %v428
        %v634 = vpop.f32.mrb[0].mxu0
        %v635 = vadd.f32 %v495, %v634
        %v636 = vpop.f32.mrb[0].mxu0
        %v637 = vpop.f32.mrb[0].mxu0
        %v638 = vadd.f32 %v495, %v637
        %v639 = vpop.f32.mrb[0].mxu0
        %640 = vmatprep.mubr.bf16.mxu0 %v453
        %641 = vmatmul.mubr.bf16.gmra.mrb[0].mxu0 %v429
        %v642 = vpop.f32.mrb[0].mxu0
        %v643 = vadd.f32 %v495, %v642
        %v644 = vpop.f32.mrb[0].mxu0
        %v645 = vpop.f32.mrb[0].mxu0
        %v646 = vadd.f32 %v495, %v645
        %v647 = vpop.f32.mrb[0].mxu0
        %648 = vmatprep.mubr.bf16.mxu0 %v454
        %649 = vmatmul.mubr.bf16.gmra.mrb[0].mxu0 %v430
        %v650 = vpop.f32.mrb[0].mxu0
        %v651 = vadd.f32 %v495, %v650
        %v652 = vpop.f32.mrb[0].mxu0
        %v653 = vpop.f32.mrb[0].mxu0
        %v654 = vadd.f32 %v495, %v653
        %v655 = vpop.f32.mrb[0].mxu0
        %656 = vmatprep.mubr.bf16.mxu0 %v455
        %657 = vmatmul.mubr.bf16.gmra.mrb[0].mxu0 %v431
        %v658 = vpop.f32.mrb[0].mxu0
        %v659 = vadd.f32 %v495, %v658
        %v660 = vpop.f32.mrb[0].mxu0
        %v661 = vpop.f32.mrb[0].mxu0
        %v662 = vadd.f32 %v495, %v661
        %v663 = vpop.f32.mrb[0].mxu0
        %664 = vmatprep.mubr.bf16.mxu0 %v456
        %665 = vmatmul.mubr.bf16.gmra.mrb[0].mxu0 %v432
        %v666 = vpop.f32.mrb[0].mxu0
        %v667 = vadd.f32 %v495, %v666
        %v668 = vpop.f32.mrb[0].mxu0
        %v669 = vpop.f32.mrb[0].mxu0
        %v670 = vadd.f32 %v495, %v669
        %v671 = vpop.f32.mrb[0].mxu0
        %672 = vmatprep.mubr.bf16.mxu0 %v457
        %673 = vmatmul.mubr.bf16.gmra.mrb[0].mxu0 %v433
        %v674 = vpop.f32.mrb[0].mxu0
        %v675 = vadd.f32 %v495, %v674
        %v676 = vpop.f32.mrb[0].mxu0
        %v677 = vpop.f32.mrb[0].mxu0
        %v678 = vadd.f32 %v495, %v677
        %v679 = vpop.f32.mrb[0].mxu0
        %680 = vmatprep.mubr.bf16.mxu0 %v458
        %681 = vmatmul.mubr.bf16.gmra.mrb[0].mxu0 %v434
        %v682 = vpop.f32.mrb[0].mxu0
        %v683 = vadd.f32 %v495, %v682
        %v684 = vpop.f32.mrb[0].mxu0
        %v685 = vpop.f32.mrb[0].mxu0
        %v686 = vadd.f32 %v495, %v685
        %v687 = vpop.f32.mrb[0].mxu0
        %688 = vdwg.mxu0
        %v689 = vmul.f32 %v627, 0.6666667
        %v690 = vmul.f32 %v630, 0.6666667
        %v691 = vmul.f32 %v635, 0.6666667
        %v692 = vmul.f32 %v638, 0.6666667
        %v693 = vmul.f32 %v643, 0.6666667
        %v694 = vmul.f32 %v646, 0.6666667
        %v695 = vmul.f32 %v651, 0.6666667
        %v696 = vmul.f32 %v654, 0.6666667
        %v697 = vmul.f32 %v659, 0.6666667
        %v698 = vmul.f32 %v662, 0.6666667
        %v699 = vmul.f32 %v667, 0.6666667
        %v700 = vmul.f32 %v670, 0.6666667
        %v701 = vmul.f32 %v675, 0.6666667
        %v702 = vmul.f32 %v678, 0.6666667
        %v703 = vmul.f32 %v683, 0.6666667
        %v704 = vmul.f32 %v686, 0.6666667
        %v705 = vmax.f32 %v689, 0.0
        %v706 = vmax.f32 %v690, 0.0
        %v707 = vmax.f32 %v691, 0.0
        %v708 = vmax.f32 %v692, 0.0
        %v709 = vmax.f32 %v693, 0.0
        %v710 = vmax.f32 %v694, 0.0
        %v711 = vmax.f32 %v695, 0.0
        %v712 = vmax.f32 %v696, 0.0
        %v713 = vmax.f32 %v697, 0.0
        %v714 = vmax.f32 %v698, 0.0
        %v715 = vmax.f32 %v699, 0.0
        %v716 = vmax.f32 %v700, 0.0
        %v717 = vmax.f32 %v701, 0.0
        %v718 = vmax.f32 %v702, 0.0
        %v719 = vmax.f32 %v703, 0.0
        %v720 = vmax.f32 %v704, 0.0
        %v721 = vmin.f32 %v705, 1.0
        %v722 = vmin.f32 %v706, 1.0
        %v723 = vmin.f32 %v707, 1.0
        %v724 = vmin.f32 %v708, 1.0
        %v725 = vmin.f32 %v709, 1.0
        %v726 = vmin.f32 %v710, 1.0
        %v727 = vmin.f32 %v711, 1.0
        %v728 = vmin.f32 %v712, 1.0
        %v729 = vmin.f32 %v713, 1.0
        %v730 = vmin.f32 %v714, 1.0
        %v731 = vmin.f32 %v715, 1.0
        %v732 = vmin.f32 %v716, 1.0
        %v733 = vmin.f32 %v717, 1.0
        %v734 = vmin.f32 %v718, 1.0
        %v735 = vmin.f32 %v719, 1.0
        %v736 = vmin.f32 %v720, 1.0
        %v737 = vld [vmem:[#allocation7] sm:$0xf]
        %v738 = vld [vmem:[#allocation7 + $0x4] sm:$0xf]
        %v739 = vld [vmem:[#allocation7 + $0x8] sm:$0xf]
        %v740 = vld [vmem:[#allocation7 + $0xc] sm:$0xf]
        %v741 = vld [vmem:[#allocation7 + $0x10] sm:$0xf]
        %v742 = vld [vmem:[#allocation7 + $0x14] sm:$0xf]
        %v743 = vld [vmem:[#allocation7 + $0x18] sm:$0xf]
        %v744 = vld [vmem:[#allocation7 + $0x1c] sm:$0xf]
        %v745 = vld [vmem:[#allocation7 + $0x20] sm:$0xf]
        %v746 = vld [vmem:[#allocation7 + $0x24] sm:$0xf]
        %v747 = vld [vmem:[#allocation7 + $0x28] sm:$0xf]
        %v748 = vld [vmem:[#allocation7 + $0x2c] sm:$0xf]
        %v749 = vld [vmem:[#allocation7 + $0x30] sm:$0xf]
        %v750 = vld [vmem:[#allocation7 + $0x34] sm:$0xf]
        %v751 = vld [vmem:[#allocation7 + $0x38] sm:$0xf]
        %v752 = vld [vmem:[#allocation7 + $0x3c] sm:$0xf]
        %v753 = vld [vmem:[%s3] sm:$0x1]
        %v754 = vpack.c.bf16 %v722, %v721
        %v755 = vpack.c.bf16 %v724, %v723
        %v756 = vpack.c.bf16 %v726, %v725
        %v757 = vpack.c.bf16 %v728, %v727
        %v758 = vpack.c.bf16 %v730, %v729
        %v759 = vpack.c.bf16 %v732, %v731
        %v760 = vpack.c.bf16 %v734, %v733
        %v761 = vpack.c.bf16 %v736, %v735
        %v762 = vlaneseq
        %v763 = vshrl.u32 %v762, 7
        %v764 = vsub.s32 0, %v763
        %v765 = vrot.slane %v753, %v764
        %v782 = vunpack.c.l.b16 %v737
        %v783 = vunpack.c.l.b16 %v738
        %v784 = vunpack.c.l.b16 %v739
        %v785 = vunpack.c.l.b16 %v740
        %v786 = vunpack.c.l.b16 %v741
        %v787 = vunpack.c.l.b16 %v742
        %v788 = vunpack.c.l.b16 %v743
        %v789 = vunpack.c.l.b16 %v744
        %v790 = vunpack.c.l.b16 %v745
        %v791 = vunpack.c.l.b16 %v746
        %v792 = vunpack.c.l.b16 %v747
        %v793 = vunpack.c.l.b16 %v748
        %v794 = vunpack.c.l.b16 %v749
        %v795 = vunpack.c.l.b16 %v750
        %v796 = vunpack.c.l.b16 %v751
        %v797 = vunpack.c.l.b16 %v752
        %v798 = vpack.c.b16 %v783, %v782
        %v799 = vpack.c.b16 %v785, %v784
        %v800 = vpack.c.b16 %v787, %v786
        %v801 = vpack.c.b16 %v789, %v788
        %v802 = vpack.c.b16 %v791, %v790
        %v803 = vpack.c.b16 %v793, %v792
        %v804 = vpack.c.b16 %v795, %v794
        %v805 = vpack.c.b16 %v797, %v796
        %814 = vmatprep.subr.bf16.mxu0 0
        %815 = vmatpush1.bf16.msra.mxu0 %v798
        %816 = vmatprep.subr.bf16.mxu0 0
        %817 = vmatpush1.bf16.msra.mxu0 %v799
        %818 = vmatprep.subr.bf16.mxu0 0
        %819 = vmatpush1.bf16.msra.mxu0 %v800
        %820 = vmatprep.subr.bf16.mxu0 0
        %821 = vmatpush1.bf16.msra.mxu0 %v801
        %822 = vmatprep.subr.bf16.mxu0 0
        %823 = vmatpush1.bf16.msra.mxu0 %v802
        %824 = vmatprep.subr.bf16.mxu0 0
        %825 = vmatpush1.bf16.msra.mxu0 %v803
        %826 = vmatprep.subr.bf16.mxu0 0
        %827 = vmatpush1.bf16.msra.mxu0 %v804
        %828 = vmatprep.subr.bf16.mxu0 0
        %829 = vmatpush1.bf16.msra.mxu0 %v805
        %830 = vmatprep.subr.bf16.mxu0 0
        %831 = vmatpush1.bf16.msra.mxu0 0
        %832 = vmatprep.subr.bf16.mxu0 0
        %833 = vmatpush1.bf16.msra.mxu0 0
        %834 = vmatprep.subr.bf16.mxu0 0
        %835 = vmatpush1.bf16.msra.mxu0 0
        %836 = vmatprep.subr.bf16.mxu0 0
        %837 = vmatpush1.bf16.msra.mxu0 0
        %838 = vmatprep.subr.bf16.mxu0 0
        %839 = vmatpush1.bf16.msra.mxu0 0
        %840 = vmatprep.subr.bf16.mxu0 0
        %841 = vmatpush1.bf16.msra.mxu0 0
        %842 = vmatprep.subr.bf16.mxu0 0
        %843 = vmatpush1.bf16.msra.mxu0 0
        %844 = vmatprep.subr.bf16.mxu0 0
        %845 = vmatpush1.bf16.msra.mxu0 0
        %846 = vmatprep.mubr.bf16.mxu0 0
        %847 = vmatmul.mubr.bf16.gmra.mrb[0].mxu0 %v754
        %v848 = vpop.f32.mrb[0].mxu0
        %v849 = vadd.f32 %v765, %v848
        %v850 = vpop.f32.mrb[0].mxu0
        %v851 = vpop.f32.mrb[0].mxu0
        %v852 = vadd.f32 %v765, %v851
        %v853 = vpop.f32.mrb[0].mxu0
        %854 = vmatprep.mubr.bf16.mxu0 0
        %855 = vmatmul.mubr.bf16.gmra.mrb[0].mxu0 %v755
        %v856 = vpop.f32.mrb[0].mxu0
        %v857 = vadd.f32 %v765, %v856
        %v858 = vpop.f32.mrb[0].mxu0
        %v859 = vpop.f32.mrb[0].mxu0
        %v860 = vadd.f32 %v765, %v859
        %v861 = vpop.f32.mrb[0].mxu0
        %862 = vmatprep.mubr.bf16.mxu0 0
        %863 = vmatmul.mubr.bf16.gmra.mrb[0].mxu0 %v756
        %v864 = vpop.f32.mrb[0].mxu0
        %v865 = vadd.f32 %v765, %v864
        %v866 = vpop.f32.mrb[0].mxu0
        %v867 = vpop.f32.mrb[0].mxu0
        %v868 = vadd.f32 %v765, %v867
        %v869 = vpop.f32.mrb[0].mxu0
        %870 = vmatprep.mubr.bf16.mxu0 0
        %871 = vmatmul.mubr.bf16.gmra.mrb[0].mxu0 %v757
        %v872 = vpop.f32.mrb[0].mxu0
        %v873 = vadd.f32 %v765, %v872
        %v874 = vpop.f32.mrb[0].mxu0
        %v875 = vpop.f32.mrb[0].mxu0
        %v876 = vadd.f32 %v765, %v875
        %v877 = vpop.f32.mrb[0].mxu0
        %878 = vmatprep.mubr.bf16.mxu0 0
        %879 = vmatmul.mubr.bf16.gmra.mrb[0].mxu0 %v758
        %v880 = vpop.f32.mrb[0].mxu0
        %v881 = vadd.f32 %v765, %v880
        %v882 = vpop.f32.mrb[0].mxu0
        %v883 = vpop.f32.mrb[0].mxu0
        %v884 = vadd.f32 %v765, %v883
        %v885 = vpop.f32.mrb[0].mxu0
        %886 = vmatprep.mubr.bf16.mxu0 0
        %887 = vmatmul.mubr.bf16.gmra.mrb[0].mxu0 %v759
        %v888 = vpop.f32.mrb[0].mxu0
        %v889 = vadd.f32 %v765, %v888
        %v890 = vpop.f32.mrb[0].mxu0
        %v891 = vpop.f32.mrb[0].mxu0
        %v892 = vadd.f32 %v765, %v891
        %v893 = vpop.f32.mrb[0].mxu0
        %894 = vmatprep.mubr.bf16.mxu0 0
        %895 = vmatmul.mubr.bf16.gmra.mrb[0].mxu0 %v760
        %v896 = vpop.f32.mrb[0].mxu0
        %v897 = vadd.f32 %v765, %v896
        %v898 = vpop.f32.mrb[0].mxu0
        %v899 = vpop.f32.mrb[0].mxu0
        %v900 = vadd.f32 %v765, %v899
        %v901 = vpop.f32.mrb[0].mxu0
        %902 = vmatprep.mubr.bf16.mxu0 0
        %903 = vmatmul.mubr.bf16.gmra.mrb[0].mxu0 %v761
        %v904 = vpop.f32.mrb[0].mxu0
        %v905 = vadd.f32 %v765, %v904
        %v906 = vpop.f32.mrb[0].mxu0
        %v907 = vpop.f32.mrb[0].mxu0
        %v908 = vadd.f32 %v765, %v907
        %v909 = vpop.f32.mrb[0].mxu0
        %910 = vdwg.mxu0
        %v911 = vmul.f32 %v849, 0.6666667
        %v912 = vmul.f32 %v852, 0.6666667
        %v913 = vmul.f32 %v857, 0.6666667
        %v914 = vmul.f32 %v860, 0.6666667
        %v915 = vmul.f32 %v865, 0.6666667
        %v916 = vmul.f32 %v868, 0.6666667
        %v917 = vmul.f32 %v873, 0.6666667
        %v918 = vmul.f32 %v876, 0.6666667
        %v919 = vmul.f32 %v881, 0.6666667
        %v920 = vmul.f32 %v884, 0.6666667
        %v921 = vmul.f32 %v889, 0.6666667
        %v922 = vmul.f32 %v892, 0.6666667
        %v923 = vmul.f32 %v897, 0.6666667
        %v924 = vmul.f32 %v900, 0.6666667
        %v925 = vmul.f32 %v905, 0.6666667
        %v926 = vmul.f32 %v908, 0.6666667
        %v927 = vmax.f32 %v911, 0.0
        %v928 = vmax.f32 %v912, 0.0
        %v929 = vmax.f32 %v913, 0.0
        %v930 = vmax.f32 %v914, 0.0
        %v931 = vmax.f32 %v915, 0.0
        %v932 = vmax.f32 %v916, 0.0
        %v933 = vmax.f32 %v917, 0.0
        %v934 = vmax.f32 %v918, 0.0
        %v935 = vmax.f32 %v919, 0.0
        %v936 = vmax.f32 %v920, 0.0
        %v937 = vmax.f32 %v921, 0.0
        %v938 = vmax.f32 %v922, 0.0
        %v939 = vmax.f32 %v923, 0.0
        %v940 = vmax.f32 %v924, 0.0
        %v941 = vmax.f32 %v925, 0.0
        %v942 = vmax.f32 %v926, 0.0
        %v943 = vmin.f32 %v927, 1.0
        %v944 = vmin.f32 %v928, 1.0
        %v945 = vmin.f32 %v929, 1.0
        %v946 = vmin.f32 %v930, 1.0
        %v947 = vmin.f32 %v931, 1.0
        %v948 = vmin.f32 %v932, 1.0
        %v949 = vmin.f32 %v933, 1.0
        %v950 = vmin.f32 %v934, 1.0
        %v951 = vmin.f32 %v935, 1.0
        %v952 = vmin.f32 %v936, 1.0
        %v953 = vmin.f32 %v937, 1.0
        %v954 = vmin.f32 %v938, 1.0
        %v955 = vmin.f32 %v939, 1.0
        %v956 = vmin.f32 %v940, 1.0
        %v957 = vmin.f32 %v941, 1.0
        %v958 = vmin.f32 %v942, 1.0
        %v959 = vld [vmem:[#allocation8] sm:$0xf]
        %v960 = vld [vmem:[#allocation8 + $0x4] sm:$0xf]
        %v961 = vld [vmem:[#allocation8 + $0x8] sm:$0xf]
        %v962 = vld [vmem:[#allocation8 + $0xc] sm:$0xf]
        %v963 = vld [vmem:[#allocation8 + $0x10] sm:$0xf]
        %v964 = vld [vmem:[#allocation8 + $0x14] sm:$0xf]
        %v965 = vld [vmem:[#allocation8 + $0x18] sm:$0xf]
        %v966 = vld [vmem:[#allocation8 + $0x1c] sm:$0xf]
        %v967 = vld [vmem:[#allocation8 + $0x20] sm:$0xf]
        %v968 = vld [vmem:[#allocation8 + $0x24] sm:$0xf]
        %v969 = vld [vmem:[#allocation8 + $0x28] sm:$0xf]
        %v970 = vld [vmem:[#allocation8 + $0x2c] sm:$0xf]
        %v971 = vld [vmem:[#allocation8 + $0x30] sm:$0xf]
        %v972 = vld [vmem:[#allocation8 + $0x34] sm:$0xf]
        %v973 = vld [vmem:[#allocation8 + $0x38] sm:$0xf]
        %v974 = vld [vmem:[#allocation8 + $0x3c] sm:$0xf]
        %v975 = vld [vmem:[%s5] sm:$0x1]
        %v976 = vpack.c.bf16 %v944, %v943
        %v977 = vpack.c.bf16 %v946, %v945
        %v978 = vpack.c.bf16 %v948, %v947
        %v979 = vpack.c.bf16 %v950, %v949
        %v980 = vpack.c.bf16 %v952, %v951
        %v981 = vpack.c.bf16 %v954, %v953
        %v982 = vpack.c.bf16 %v956, %v955
        %v983 = vpack.c.bf16 %v958, %v957
        %v984 = vlaneseq
        %v985 = vshrl.u32 %v984, 7
        %v986 = vsub.s32 0, %v985
        %v987 = vrot.slane %v975, %v986
        %v1004 = vunpack.c.l.b16 %v959
        %v1005 = vunpack.c.l.b16 %v960
        %v1006 = vunpack.c.l.b16 %v961
        %v1007 = vunpack.c.l.b16 %v962
        %v1008 = vunpack.c.l.b16 %v963
        %v1009 = vunpack.c.l.b16 %v964
        %v1010 = vunpack.c.l.b16 %v965
        %v1011 = vunpack.c.l.b16 %v966
        %v1012 = vunpack.c.l.b16 %v967
        %v1013 = vunpack.c.l.b16 %v968
        %v1014 = vunpack.c.l.b16 %v969
        %v1015 = vunpack.c.l.b16 %v970
        %v1016 = vunpack.c.l.b16 %v971
        %v1017 = vunpack.c.l.b16 %v972
        %v1018 = vunpack.c.l.b16 %v973
        %v1019 = vunpack.c.l.b16 %v974
        %v1020 = vpack.c.b16 %v1005, %v1004
        %v1021 = vpack.c.b16 %v1007, %v1006
        %v1022 = vpack.c.b16 %v1009, %v1008
        %v1023 = vpack.c.b16 %v1011, %v1010
        %v1024 = vpack.c.b16 %v1013, %v1012
        %v1025 = vpack.c.b16 %v1015, %v1014
        %v1026 = vpack.c.b16 %v1017, %v1016
        %v1027 = vpack.c.b16 %v1019, %v1018
        %1036 = vmatprep.subr.bf16.mxu0 0
        %1037 = vmatpush1.bf16.msra.mxu0 %v1020
        %1038 = vmatprep.subr.bf16.mxu0 0
        %1039 = vmatpush1.bf16.msra.mxu0 %v1021
        %1040 = vmatprep.subr.bf16.mxu0 0
        %1041 = vmatpush1.bf16.msra.mxu0 %v1022
        %1042 = vmatprep.subr.bf16.mxu0 0
        %1043 = vmatpush1.bf16.msra.mxu0 %v1023
        %1044 = vmatprep.subr.bf16.mxu0 0
        %1045 = vmatpush1.bf16.msra.mxu0 %v1024
        %1046 = vmatprep.subr.bf16.mxu0 0
        %1047 = vmatpush1.bf16.msra.mxu0 %v1025
        %1048 = vmatprep.subr.bf16.mxu0 0
        %1049 = vmatpush1.bf16.msra.mxu0 %v1026
        %1050 = vmatprep.subr.bf16.mxu0 0
        %1051 = vmatpush1.bf16.msra.mxu0 %v1027
        %1052 = vmatprep.subr.bf16.mxu0 0
        %1053 = vmatpush1.bf16.msra.mxu0 0
        %1054 = vmatprep.subr.bf16.mxu0 0
        %1055 = vmatpush1.bf16.msra.mxu0 0
        %1056 = vmatprep.subr.bf16.mxu0 0
        %1057 = vmatpush1.bf16.msra.mxu0 0
        %1058 = vmatprep.subr.bf16.mxu0 0
        %1059 = vmatpush1.bf16.msra.mxu0 0
        %1060 = vmatprep.subr.bf16.mxu0 0
        %1061 = vmatpush1.bf16.msra.mxu0 0
        %1062 = vmatprep.subr.bf16.mxu0 0
        %1063 = vmatpush1.bf16.msra.mxu0 0
        %1064 = vmatprep.subr.bf16.mxu0 0
        %1065 = vmatpush1.bf16.msra.mxu0 0
        %1066 = vmatprep.subr.bf16.mxu0 0
        %1067 = vmatpush1.bf16.msra.mxu0 0
        %1068 = vmatprep.mubr.bf16.mxu0 0
        %1069 = vmatmul.mubr.bf16.gmra.mrb[0].mxu0 %v976
        %v1070 = vpop.f32.mrb[0].mxu0
        %v1071 = vadd.f32 %v987, %v1070
        %v1072 = vpop.f32.mrb[0].mxu0
        %v1073 = vpop.f32.mrb[0].mxu0
        %v1074 = vadd.f32 %v987, %v1073
        %v1075 = vpop.f32.mrb[0].mxu0
        %1076 = vmatprep.mubr.bf16.mxu0 0
        %1077 = vmatmul.mubr.bf16.gmra.mrb[0].mxu0 %v977
        %v1078 = vpop.f32.mrb[0].mxu0
        %v1079 = vadd.f32 %v987, %v1078
        %v1080 = vpop.f32.mrb[0].mxu0
        %v1081 = vpop.f32.mrb[0].mxu0
        %v1082 = vadd.f32 %v987, %v1081
        %v1083 = vpop.f32.mrb[0].mxu0
        %1084 = vmatprep.mubr.bf16.mxu0 0
        %1085 = vmatmul.mubr.bf16.gmra.mrb[0].mxu0 %v978
        %v1086 = vpop.f32.mrb[0].mxu0
        %v1087 = vadd.f32 %v987, %v1086
        %v1088 = vpop.f32.mrb[0].mxu0
        %v1089 = vpop.f32.mrb[0].mxu0
        %v1090 = vadd.f32 %v987, %v1089
        %v1091 = vpop.f32.mrb[0].mxu0
        %1092 = vmatprep.mubr.bf16.mxu0 0
        %1093 = vmatmul.mubr.bf16.gmra.mrb[0].mxu0 %v979
        %v1094 = vpop.f32.mrb[0].mxu0
        %v1095 = vadd.f32 %v987, %v1094
        %v1096 = vpop.f32.mrb[0].mxu0
        %v1097 = vpop.f32.mrb[0].mxu0
        %v1098 = vadd.f32 %v987, %v1097
        %v1099 = vpop.f32.mrb[0].mxu0
        %1100 = vmatprep.mubr.bf16.mxu0 0
        %1101 = vmatmul.mubr.bf16.gmra.mrb[0].mxu0 %v980
        %v1102 = vpop.f32.mrb[0].mxu0
        %v1103 = vadd.f32 %v987, %v1102
        %v1104 = vpop.f32.mrb[0].mxu0
        %v1105 = vpop.f32.mrb[0].mxu0
        %v1106 = vadd.f32 %v987, %v1105
        %v1107 = vpop.f32.mrb[0].mxu0
        %1108 = vmatprep.mubr.bf16.mxu0 0
        %1109 = vmatmul.mubr.bf16.gmra.mrb[0].mxu0 %v981
        %v1110 = vpop.f32.mrb[0].mxu0
        %v1111 = vadd.f32 %v987, %v1110
        %v1112 = vpop.f32.mrb[0].mxu0
        %v1113 = vpop.f32.mrb[0].mxu0
        %v1114 = vadd.f32 %v987, %v1113
        %v1115 = vpop.f32.mrb[0].mxu0
        %1116 = vmatprep.mubr.bf16.mxu0 0
        %1117 = vmatmul.mubr.bf16.gmra.mrb[0].mxu0 %v982
        %v1118 = vpop.f32.mrb[0].mxu0
        %v1119 = vadd.f32 %v987, %v1118
        %v1120 = vpop.f32.mrb[0].mxu0
        %v1121 = vpop.f32.mrb[0].mxu0
        %v1122 = vadd.f32 %v987, %v1121
        %v1123 = vpop.f32.mrb[0].mxu0
        %1124 = vmatprep.mubr.bf16.mxu0 0
        %1125 = vmatmul.mubr.bf16.gmra.mrb[0].mxu0 %v983
        %v1126 = vpop.f32.mrb[0].mxu0
        %v1127 = vadd.f32 %v987, %v1126
        %v1128 = vpop.f32.mrb[0].mxu0
        %v1129 = vpop.f32.mrb[0].mxu0
        %v1130 = vadd.f32 %v987, %v1129
        %v1131 = vpop.f32.mrb[0].mxu0
        %1132 = vdwg.mxu0
        %v1133 = vmul.f32 %v1071, 0.6666667
        %v1134 = vmul.f32 %v1074, 0.6666667
        %v1135 = vmul.f32 %v1079, 0.6666667
        %v1136 = vmul.f32 %v1082, 0.6666667
        %v1137 = vmul.f32 %v1087, 0.6666667
        %v1138 = vmul.f32 %v1090, 0.6666667
        %v1139 = vmul.f32 %v1095, 0.6666667
        %v1140 = vmul.f32 %v1098, 0.6666667
        %v1141 = vmul.f32 %v1103, 0.6666667
        %v1142 = vmul.f32 %v1106, 0.6666667
        %v1143 = vmul.f32 %v1111, 0.6666667
        %v1144 = vmul.f32 %v1114, 0.6666667
        %v1145 = vmul.f32 %v1119, 0.6666667
        %v1146 = vmul.f32 %v1122, 0.6666667
        %v1147 = vmul.f32 %v1127, 0.6666667
        %v1148 = vmul.f32 %v1130, 0.6666667
        %v1149 = vmax.f32 %v1133, 0.0
        %v1150 = vmax.f32 %v1134, 0.0
        %v1151 = vmax.f32 %v1135, 0.0
        %v1152 = vmax.f32 %v1136, 0.0
        %v1153 = vmax.f32 %v1137, 0.0
        %v1154 = vmax.f32 %v1138, 0.0
        %v1155 = vmax.f32 %v1139, 0.0
        %v1156 = vmax.f32 %v1140, 0.0
        %v1157 = vmax.f32 %v1141, 0.0
        %v1158 = vmax.f32 %v1142, 0.0
        %v1159 = vmax.f32 %v1143, 0.0
        %v1160 = vmax.f32 %v1144, 0.0
        %v1161 = vmax.f32 %v1145, 0.0
        %v1162 = vmax.f32 %v1146, 0.0
        %v1163 = vmax.f32 %v1147, 0.0
        %v1164 = vmax.f32 %v1148, 0.0
        %v1165 = vmin.f32 %v1149, 1.0
        %v1166 = vmin.f32 %v1150, 1.0
        %v1167 = vmin.f32 %v1151, 1.0
        %v1168 = vmin.f32 %v1152, 1.0
        %v1169 = vmin.f32 %v1153, 1.0
        %v1170 = vmin.f32 %v1154, 1.0
        %v1171 = vmin.f32 %v1155, 1.0
        %v1172 = vmin.f32 %v1156, 1.0
        %v1173 = vmin.f32 %v1157, 1.0
        %v1174 = vmin.f32 %v1158, 1.0
        %v1175 = vmin.f32 %v1159, 1.0
        %v1176 = vmin.f32 %v1160, 1.0
        %v1177 = vmin.f32 %v1161, 1.0
        %v1178 = vmin.f32 %v1162, 1.0
        %v1179 = vmin.f32 %v1163, 1.0
        %v1180 = vmin.f32 %v1164, 1.0
        %1181 = vst [vmem:[%s406] sm:$0xff] %v1165
        %1182 = vst [vmem:[%s406 + $0x8] sm:$0xff] %v1166
        %1183 = vst [vmem:[%s406 + $0x10] sm:$0xff] %v1167
        %1184 = vst [vmem:[%s406 + $0x18] sm:$0xff] %v1168
        %1185 = vst [vmem:[%s406 + $0x20] sm:$0xff] %v1169
        %1186 = vst [vmem:[%s406 + $0x28] sm:$0xff] %v1170
        %1187 = vst [vmem:[%s406 + $0x30] sm:$0xff] %v1171
        %1188 = vst [vmem:[%s406 + $0x38] sm:$0xff] %v1172
        %1189 = vst [vmem:[%s406 + $0x40] sm:$0xff] %v1173
        %1190 = vst [vmem:[%s406 + $0x48] sm:$0xff] %v1174
        %1191 = vst [vmem:[%s406 + $0x50] sm:$0xff] %v1175
        %1192 = vst [vmem:[%s406 + $0x58] sm:$0xff] %v1176
        %1193 = vst [vmem:[%s406 + $0x60] sm:$0xff] %v1177
        %1194 = vst [vmem:[%s406 + $0x68] sm:$0xff] %v1178
        %1195 = vst [vmem:[%s406 + $0x70] sm:$0xff] %v1179
        %1196 = vst [vmem:[%s406 + $0x78] sm:$0xff] %v1180
        %s1197 = sand.u32 %s215, 1
        %s1198 = scalar_lea.sflag [#allocation4], %s1197
        %s1199 = sand.u32 %s215, 1
        %s1200 = smul.addr %s1199, 128
        %s1201 = scalar_lea.vmem [#allocation11], %s1200
        // Predicated region
        $region73: #{tpu_custom_call.1} parent=51 // pred_check
          %p1202 = pneg %p225
        $region74: #{tpu_custom_call.1} parent=51 // pred_check_branch
          %1204 = sbr.rel (%p1202) target = $region76
        $region75: #{tpu_custom_call.1} parent=51 // pred_region
          %s1205 = smul.u32 16, %s29
          %s1207 = ssub.s32 2048, 2048
          %1208 = vsyncadd %s1198, %s1207
          %s1209 = smul.addr %s1205, 128
          %s1210 = scalar_lea.hbm %s8, %s1209
          %s1211 = sshll.u32 %s1201, 4
          %s1212 = int_to_ptr.vmem [resolvable:$true] %s1211
          %1217 = dma.vmem_to_hbm [thread:$0]  %s1212, 2048, %s1210, %s1198, 128, 128, 8
        $region76: #{tpu_custom_call.1} parent=51 // pred_fallthru
          _
      $region52: #{tpu_custom_call.1} parent=5 // pred_fallthru
        _
      %p1218 = scmp.le.s32.totalorder 2, %s24
      // Predicated region
      $region77: #{tpu_custom_call.1} parent=5 // pred_check
        %p1219 = pneg %p1218
      $region78: #{tpu_custom_call.1} parent=5 // pred_check_branch
        %1221 = sbr.rel (%p1219) target = $region80
      $region79: #{tpu_custom_call.1} parent=5 // pred_region
        %s1222 = ssub.s32 %s24, 2
        // Predicated region
        $region81: #{tpu_custom_call.1} parent=79 // pred_check
          %p1223 = pneg %p231
        $region82: #{tpu_custom_call.1} parent=79 // pred_check_branch
          %1225 = sbr.rel (%p1223) target = $region84
        $region83: #{tpu_custom_call.1} parent=79 // pred_region
          %s1226 = sand.u32 %s216, 1
          %s1227 = scalar_lea.sflag [#allocation4], %s1226
          %s1228 = sand.u32 %s216, 1
          %s1229 = smul.addr %s1228, 128
          %s1230 = scalar_lea.vmem [#allocation11], %s1229
          %1231 = dma.done %s1227, 2048
        $region84: #{tpu_custom_call.1} parent=79 // pred_fallthru
          _
      $region80: #{tpu_custom_call.1} parent=5 // pred_fallthru
        _
    $region6: #{tpu_custom_call.1} parent=1 // loop_footer
      %s28 = sadd.s32 1, %s24
    $region7: #{tpu_custom_call.1} parent=1 // loop_footer_branch
      %23 = sbr.rel target = $region3
    $region8: #{tpu_custom_call.1} parent=1 // loop_exit
      _
    %1232 = vsyncpa [#allocation3], 1
    %s1233 = scalar_lea.sflag [#allocation3], 1
    %1234 = vsyncpa %s1233, 1
    %1235 = vsyncpa [#allocation6], 1
    %s1236 = scalar_lea.sflag [#allocation6], 1
    %1237 = vsyncpa %s1236, 1
    %1238 = vsyncpa [#allocation9], 1
    %1239 = vsyncpa [#allocation4], 1
    %s1240 = scalar_lea.sflag [#allocation4], 1
    %1241 = vsyncpa %s1240, 1

</llo_original>
